<compile_context>
chip_gen: v7x
topology: tpu7x:2x2x1
jax: 0.10.0
libtpu: 0.0.40
codegen_flags: <defaults>
</compile_context>

<pallas_src>
import functools

import jax
import jax.numpy as jnp
import numpy as np
from jax.experimental import pallas as pl
from jax.experimental.pallas import tpu as pltpu

_LANES = 128


def _glove_loss_kernel(w_ref, wt_ref, side_ref, loss_ref, *, x_max, alpha):
    step = pl.program_id(1)

    @pl.when(step == 0)
    def _():
        loss_ref[...] = jnp.zeros_like(loss_ref)

    # (E, TB) lane-dense tiles of the gathered embeddings; upcast so the
    # multiply/accumulate stays f32 even when streaming bf16 (v5e VPU has no
    # native bf16 math).
    w = w_ref[...].astype(jnp.float32)
    wt = wt_ref[...].astype(jnp.float32)
    dot = jnp.sum(w * wt, axis=0, keepdims=True)            # (1, TB)

    side = side_ref[...]                                     # (3, TB) f32
    b = side[0:1, :]
    bt = side[1:2, :]
    coocs = side[2:3, :]

    out = dot + b + bt                                       # (1, TB)
    # GloVe weighting / log hit the EUP slot, which is idle in this HBM-bound
    # kernel -> effectively free; keep them here rather than in the wrapper.
    weights = jnp.power(jnp.minimum(coocs / x_max, 1.0), alpha)
    diff = out - jnp.log(coocs)                              # == out.T - log(coocs)
    partial = 0.5 * jnp.sum(weights * diff * diff)

    loss_ref[...] = loss_ref[...] + partial                  # broadcast to (8, 128)


def glove_loss_pallas(w, w_tilde, b, b_tilde, coocs, *, x_max, alpha,
                      tb=None, n_splits=2, stream_dtype=None,
                      vmem_limit_bytes=32 * 1024 * 1024):
    """w, w_tilde: (B, E); b, b_tilde: (B, 1); coocs: (B,). Returns scalar f32 loss."""
    B, E = w.shape
    stream_dtype = jnp.dtype(w.dtype if stream_dtype is None else stream_dtype)

    # Lane-dense layout: batch -> lanes (last dim), embedding dim -> sublanes.
    w_t = w.astype(stream_dtype).T                           # (E, B)
    wt_t = w_tilde.astype(stream_dtype).T                    # (E, B)
    side = jnp.stack([b.reshape(-1), b_tilde.reshape(-1),
                      coocs.reshape(-1)], axis=0).astype(jnp.float32)   # (3, B)

    # ---- tile selection ---------------------------------------------------
    if tb is None:
        # ~2 MiB per streamed embedding block keeps the double-buffered
        # pipeline far under the scoped-VMEM budget on v5e/v6e/v7x while
        # amortising the ~0.35 us per-grid-step overhead.
        target_block_bytes = 2 * 1024 * 1024
        tb = (target_block_bytes // (E * stream_dtype.itemsize)) // _LANES * _LANES
        tb = int(max(_LANES, min(tb, 8192)))

    if B <= tb:
        # Single block: block lane dim == full (possibly small) batch dim,
        # which BlockSpec allows even when it is not a multiple of 128.
        tb, n_splits, steps, b_pad = B, 1, 1, B
    else:
        num_tiles = -(-B // tb)
        n_splits = max(1, min(int(n_splits), num_tiles))
        num_tiles = -(-num_tiles // n_splits) * n_splits
        steps = num_tiles // n_splits
        b_pad = num_tiles * tb

    pad = b_pad - B
    if pad:
        w_t = jnp.pad(w_t, ((0, 0), (0, pad)))
        wt_t = jnp.pad(wt_t, ((0, 0), (0, pad)))
        side = jnp.pad(side, ((0, 0), (0, pad)))
        # Padded pairs: w = w_tilde = b = b_tilde = 0 and cooc = 1
        # -> out = 0, log(cooc) = 0, so their loss contribution is exactly 0.
        side = side.at[2, B:].set(1.0)

    kernel = functools.partial(_glove_loss_kernel,
                               x_max=float(x_max), alpha=float(alpha))

    emb_spec = pl.BlockSpec((E, tb), lambda s, i: (0, s * steps + i))
    side_spec = pl.BlockSpec((3, tb), lambda s, i: (0, s * steps + i))
    # One lane-dense (8, 128) partial-sum slab per parallel split (unmasked
    # full-width stores; per-core accumulator on multi-TC chips).
    out_spec = pl.BlockSpec((8, _LANES), lambda s, i: (0, s))

    partials = pl.pallas_call(
        kernel,
        out_shape=jax.ShapeDtypeStruct((8, n_splits * _LANES), jnp.float32),
        grid_spec=pltpu.PrefetchScalarGridSpec(
            num_scalar_prefetch=0,
            grid=(n_splits, steps),
            in_specs=[emb_spec, emb_spec, side_spec],
            out_specs=out_spec,
        ),
        compiler_params=pltpu.CompilerParams(
            dimension_semantics=("parallel", "arbitrary"),
            vmem_limit_bytes=int(vmem_limit_bytes)),
    )(w_t, wt_t, side)

    # Each split broadcast-fills its own slab with its partial sum.
    return jnp.sum(partials[0, ::_LANES])


class GloVePallas:
    """JAX/Pallas port of the PyTorch GloVe module (synthetic deterministic init)."""

    def __init__(self, key, n_tokens, embedding_size,
                 cooc_rows, cooc_cols, cooc_vals, x_max=100, alpha=0.75):
        self.embed_size = embedding_size
        self.x_max = x_max
        self.alpha = alpha
        self.n_tokens = n_tokens
        # sparse COO representation of the co-occurrence matrix
        self.cooc_rows = cooc_rows
        self.cooc_cols = cooc_cols
        self.cooc_vals = cooc_vals
        half_range = 0.5 / embedding_size
        k1, k2, k3, k4 = jax.random.split(key, 4)
        uni = lambda k, shape: jax.random.uniform(
            k, shape, jnp.float32, minval=-half_range, maxval=half_range)
        self.embedding = uni(k1, (n_tokens, embedding_size))
        self.embedding_tilde = uni(k2, (n_tokens, embedding_size))
        self.bias = uni(k3, (n_tokens, 1))
        self.bias_tilde = uni(k4, (n_tokens, 1))

    def forward(self, indices, *, stream_dtype=None, tb=None, n_splits=2):
        rows = self.cooc_rows[indices]
        cols = self.cooc_cols[indices]
        coocs = self.cooc_vals[indices]
        # embedding gathers are plain-JAX glue; the fused loss math is the kernel
        w = jnp.take(self.embedding, rows, axis=0)
        w_tilde = jnp.take(self.embedding_tilde, cols, axis=0)
        b = jnp.take(self.bias, rows, axis=0)
        b_tilde = jnp.take(self.bias_tilde, cols, axis=0)
        return glove_loss_pallas(w, w_tilde, b, b_tilde, coocs,
                                 x_max=self.x_max, alpha=self.alpha,
                                 tb=tb, n_splits=n_splits,
                                 stream_dtype=stream_dtype)

    def forward_ref(self, indices):
        """Pure-JAX reference matching the PyTorch forward exactly."""
        rows = self.cooc_rows[indices]
        cols = self.cooc_cols[indices]
        coocs = self.cooc_vals[indices]
        weights = jnp.power(jnp.minimum(coocs / self.x_max, 1.0), self.alpha)
        w = self.embedding[rows]
        wt = self.embedding_tilde[cols]
        b = self.bias[rows]
        bt = self.bias_tilde[cols]
        out = jnp.sum(w * wt, axis=1, keepdims=True) + b + bt      # (B, 1)
        return jnp.sum(weights * jnp.square(out.T - jnp.log(coocs))) * 0.5

    def embeddings(self):
        return np.asarray(self.embedding + self.embedding_tilde)


if __name__ == "__main__":
    key = jax.random.PRNGKey(0)
    kmodel, krow, kcol, kval, kidx1, kidx2 = jax.random.split(key, 6)

    n_tokens, embed_size, nnz = 64, 32, 40

    # synthetic sparse co-occurrence matrix (COO): positive values so log() is defined
    cooc_rows = jax.random.randint(krow, (nnz,), 0, n_tokens, dtype=jnp.int32)
    cooc_cols = jax.random.randint(kcol, (nnz,), 0, n_tokens, dtype=jnp.int32)
    cooc_vals = jax.random.uniform(kval, (nnz,), jnp.float32, minval=1.0, maxval=200.0)

    model = GloVePallas(kmodel, n_tokens, embed_size,
                        cooc_rows, cooc_cols, cooc_vals, x_max=100, alpha=0.75)

    # 1) small batch -> single lane-dense block, grid (1, 1)
    idx_small = jax.random.randint(kidx1, (16,), 0, nnz, dtype=jnp.int32)
    loss = jax.block_until_ready(model.forward(idx_small))
    ref = model.forward_ref(idx_small)
    assert np.allclose(np.asarray(loss), np.asarray(ref),
                       rtol=1e-5, atol=1e-5), (loss, ref)

    # 2) larger batch, forced small tile -> multi-tile grid with batch padding
    #    and a 2-way parallel split (exercises the v7x two-TensorCore path;
    #    it is just a serial loop on v5e/v6e).
    idx_big = jax.random.randint(kidx2, (400,), 0, nnz, dtype=jnp.int32)
    loss_big = jax.block_until_ready(model.forward(idx_big, tb=128, n_splits=2))
    ref_big = model.forward_ref(idx_big)
    assert np.allclose(np.asarray(loss_big), np.asarray(ref_big),
                       rtol=1e-5, atol=1e-5), (loss_big, ref_big)

    # 3) optional bf16 streaming of the embeddings (halves the dominant HBM
    #    traffic); accumulation stays f32 in-kernel, so only a small tolerance
    #    relaxation versus the f32 reference.
    loss_bf16 = jax.block_until_ready(
        model.forward(idx_big, tb=128, n_splits=2, stream_dtype=jnp.bfloat16))
    assert np.allclose(np.asarray(loss_bf16), np.asarray(ref_big),
                       rtol=1e-3, atol=1e-3), (loss_bf16, ref_big)

    print("KERNEL_OK")
</pallas_src>

<mosaic_0001>
module attributes {stable_mosaic.version = 11 : i64} {
  func.func @_glove_loss_kernel(%arg0: i32, %arg1: i32, %arg2: memref<32x16xf32, #tpu.memory_space<vmem>>, %arg3: memref<32x16xf32, #tpu.memory_space<vmem>>, %arg4: memref<3x16xf32, #tpu.memory_space<vmem>>, %arg5: memref<8x128xf32, #tpu.memory_space<vmem>>) attributes {dimension_semantics = [#tpu.dimension_semantics<parallel>, #tpu.dimension_semantics<arbitrary>], iteration_bounds = array<i64: 1, 1>, scalar_prefetch = 0 : i64, scratch_operands = 0 : i64, tpu.core_type = #tpu.core_type<tc>, window_params = [{transform_indices = @transform_0, window_bounds = array<i64: 32, 16>}, {transform_indices = @transform_1, window_bounds = array<i64: 32, 16>}, {transform_indices = @transform_2, window_bounds = array<i64: 3, 16>}, {transform_indices = @transform_3, window_bounds = array<i64: 8, 128>}]} {
    %c0_i32 = arith.constant 0 : i32
    %0 = arith.cmpi eq, %arg1, %c0_i32 : i32
    %1 = arith.extui %0 : i1 to i32
    %c0_i32_0 = arith.constant 0 : i32
    %2 = arith.cmpi ne, %1, %c0_i32_0 : i32
    scf.if %2 {
      %cst_15 = arith.constant 0.000000e+00 : f32
      %33 = vector.broadcast %cst_15 : f32 to vector<8x128xf32>
      %c0_16 = arith.constant 0 : index
      %c0_17 = arith.constant 0 : index
      %34 = vector.load %arg5[%c0_16, %c0_17] : memref<8x128xf32, #tpu.memory_space<vmem>>, vector<8x128xf32>
      tpu.vector_store %arg5[%c0_16, %c0_17], %33 {strides = array<i32>} : memref<8x128xf32, #tpu.memory_space<vmem>>, vector<8x128xf32>,
    } else {
    }
    %c0 = arith.constant 0 : index
    %c0_1 = arith.constant 0 : index
    %3 = vector.load %arg2[%c0, %c0_1] : memref<32x16xf32, #tpu.memory_space<vmem>>, vector<32x16xf32>
    %c0_2 = arith.constant 0 : index
    %c0_3 = arith.constant 0 : index
    %4 = vector.load %arg3[%c0_2, %c0_3] : memref<32x16xf32, #tpu.memory_space<vmem>>, vector<32x16xf32>
    %5 = arith.mulf %3, %4 : vector<32x16xf32>
    %cst = arith.constant dense<0.000000e+00> : vector<16xf32>
    %6 = vector.multi_reduction <add>, %5, %cst [0] : vector<32x16xf32> to vector<16xf32>
    %7 = vector.shape_cast %6 : vector<16xf32> to vector<1x16xf32>
    %c0_4 = arith.constant 0 : index
    %c0_5 = arith.constant 0 : index
    %8 = vector.load %arg4[%c0_4, %c0_5] : memref<3x16xf32, #tpu.memory_space<vmem>>, vector<3x16xf32>
    %9 = vector.extract_strided_slice %8 {offsets = [0, 0], sizes = [1, 16], strides = [1, 1]} : vector<3x16xf32> to vector<1x16xf32>
    %10 = vector.extract_strided_slice %8 {offsets = [1, 0], sizes = [1, 16], strides = [1, 1]} : vector<3x16xf32> to vector<1x16xf32>
    %11 = vector.extract_strided_slice %8 {offsets = [2, 0], sizes = [1, 16], strides = [1, 1]} : vector<3x16xf32> to vector<1x16xf32>
    %12 = arith.addf %7, %9 : vector<1x16xf32>
    %13 = arith.addf %12, %10 : vector<1x16xf32>
    %cst_6 = arith.constant 1.000000e+02 : f32
    %14 = vector.broadcast %cst_6 : f32 to vector<1x16xf32>
    %15 = arith.divf %11, %14 : vector<1x16xf32>
    %cst_7 = arith.constant 1.000000e+00 : f32
    %16 = vector.broadcast %cst_7 : f32 to vector<1x16xf32>
    %17 = arith.minimumf %15, %16 : vector<1x16xf32>
    %cst_8 = arith.constant 7.500000e-01 : f32
    %18 = vector.broadcast %cst_8 : f32 to vector<1x16xf32>
    %19 = math.powf %17, %18 : vector<1x16xf32>
    %20 = math.log %11 : vector<1x16xf32>
    %21 = arith.subf %13, %20 : vector<1x16xf32>
    %22 = arith.mulf %19, %21 : vector<1x16xf32>
    %23 = arith.mulf %22, %21 : vector<1x16xf32>
    %24 = vector.shape_cast %23 : vector<1x16xf32> to vector<1x1x16xf32>
    %cst_9 = arith.constant dense<0.000000e+00> : vector<1xf32>
    %25 = vector.multi_reduction <add>, %24, %cst_9 [1, 2] : vector<1x1x16xf32> to vector<1xf32>
    %26 = vector.shape_cast %25 : vector<1xf32> to vector<1x1x1xf32>
    %27 = vector.extract %26[0, 0, 0] : f32 from vector<1x1x1xf32>
    %cst_10 = arith.constant 5.000000e-01 : f32
    %28 = arith.mulf %cst_10, %27 : f32
    %c0_11 = arith.constant 0 : index
    %c0_12 = arith.constant 0 : index
    %29 = vector.load %arg5[%c0_11, %c0_12] : memref<8x128xf32, #tpu.memory_space<vmem>>, vector<8x128xf32>
    %30 = vector.broadcast %28 : f32 to vector<8x128xf32>
    %31 = arith.addf %29, %30 : vector<8x128xf32>
    %c0_13 = arith.constant 0 : index
    %c0_14 = arith.constant 0 : index
    %32 = vector.load %arg5[%c0_13, %c0_14] : memref<8x128xf32, #tpu.memory_space<vmem>>, vector<8x128xf32>
    tpu.vector_store %arg5[%c0_13, %c0_14], %31 {strides = array<i32>} : memref<8x128xf32, #tpu.memory_space<vmem>>, vector<8x128xf32>,
    return
  }
  func.func @transform_0(%arg0: i32, %arg1: i32) -> (i32, i32) {
    %c1_i32 = arith.constant 1 : i32
    %0 = arith.muli %arg0, %c1_i32 : i32
    %1 = arith.addi %0, %arg1 : i32
    %c0_i32 = arith.constant 0 : i32
    %c0_i32_0 = arith.constant 0 : i32
    return %c0_i32, %1 : i32, i32
  }
  func.func @transform_1(%arg0: i32, %arg1: i32) -> (i32, i32) {
    %c1_i32 = arith.constant 1 : i32
    %0 = arith.muli %arg0, %c1_i32 : i32
    %1 = arith.addi %0, %arg1 : i32
    %c0_i32 = arith.constant 0 : i32
    %c0_i32_0 = arith.constant 0 : i32
    return %c0_i32, %1 : i32, i32
  }
  func.func @transform_2(%arg0: i32, %arg1: i32) -> (i32, i32) {
    %c1_i32 = arith.constant 1 : i32
    %0 = arith.muli %arg0, %c1_i32 : i32
    %1 = arith.addi %0, %arg1 : i32
    %c0_i32 = arith.constant 0 : i32
    %c0_i32_0 = arith.constant 0 : i32
    return %c0_i32, %1 : i32, i32
  }
  func.func @transform_3(%arg0: i32, %arg1: i32) -> (i32, i32) {
    %c0_i32 = arith.constant 0 : i32
    %c0_i32_0 = arith.constant 0 : i32
    return %c0_i32, %arg0 : i32, i32
  }
}

</mosaic_0001>

<llo_original>
// kernel: tpu_custom_call.1
$region0: #{tpu_custom_call.1}
  #allocation0 [shape = 'u32[]', space=smem, size = 0x4, offset = 0x4, fixed_abs, tag = 'smem constant byte address 0x4 - core index']
  #allocation1 [shape = 'u32[144,128]{1,0:T(1,128)}', space=vmem, size = 0x12000, scoped, tag = 'internal scratch']
  %s0 = inlined_call_operand.vmem [shape: f32[32,16], index: 0, kind: input, shape index: {}]
  %s1 = inlined_call_operand.vmem [shape: f32[32,16], index: 1, kind: input, shape index: {}]
  %s2 = inlined_call_operand.vmem [shape: f32[3,16], index: 2, kind: input, shape index: {}]
  %s3 = inlined_call_operand.hbm [shape: f32[8,128], index: 3, kind: output, shape index: {}]
  %s4 = sld [smem:[#allocation0]]
  $region26: #{tpu_custom_call.1} parent=0
    _
  %s6 = ssub.s32 1, %s4
  %s7 = scalar_select 0, %s6, %s4
  $region1: #{tpu_custom_call.1} parent=0
    #allocation2 [shape = 'u8[4096]{0}', space=vmem, size = 0x1000, scoped, tag = 'output window, operand 0, single buffered']
    #allocation3 [shape = 's32[1]{0}', space=sflag, size = 0x4, scoped, tag = 'scoped memory for tpu_custom_call.1']
    %8 = vsyncpa [#allocation3], 0
    // Predicated region
    $region2: #{tpu_custom_call.1} parent=1 // pred_check
      _
    $region3: #{tpu_custom_call.1} parent=1 // pred_check_branch
      %10 = sbr.rel (0) target = $region5
    $region4: #{tpu_custom_call.1} parent=1 // pred_region
      %s11 = sadd.s32 0, 0
      %p12 = scmp.lt.s32.totalorder %s11, 0
      %s13 = scalar_select %p12, %s11, 0
      %s14 = smul.addr %s13, 8
      %s15 = scalar_lea.vmem %s0, %s14
      %s16 = sadd.s32 0, 0
    $region5: #{tpu_custom_call.1} parent=1 // pred_fallthru
      _
    // Predicated region
    $region6: #{tpu_custom_call.1} parent=1 // pred_check
      _
    $region7: #{tpu_custom_call.1} parent=1 // pred_check_branch
      %18 = sbr.rel (0) target = $region9
    $region8: #{tpu_custom_call.1} parent=1 // pred_region
      %s19 = sadd.s32 0, 0
      %p20 = scmp.lt.s32.totalorder %s19, 0
      %s21 = scalar_select %p20, %s19, 0
      %s22 = smul.addr %s21, 8
      %s23 = scalar_lea.vmem %s1, %s22
      %s24 = sadd.s32 0, 0
    $region9: #{tpu_custom_call.1} parent=1 // pred_fallthru
      _
    // Predicated region
    $region10: #{tpu_custom_call.1} parent=1 // pred_check
      _
    $region11: #{tpu_custom_call.1} parent=1 // pred_check_branch
      %26 = sbr.rel (0) target = $region13
    $region12: #{tpu_custom_call.1} parent=1 // pred_region
      %s27 = sadd.s32 0, 0
      %p28 = scmp.lt.s32.totalorder %s27, 0
      %s29 = scalar_select %p28, %s27, 0
      %s30 = smul.addr %s29, 4
      %s31 = scalar_lea.vmem %s2, %s30
      %s32 = sadd.s32 0, 0
    $region13: #{tpu_custom_call.1} parent=1 // pred_fallthru
      _
    %s33 = sadd.s32 0, 0
    %p34 = scmp.lt.s32.totalorder %s33, 0
    %s35 = scalar_select %p34, %s33, 0
    %s36 = smul.addr %s35, 8
    %s37 = scalar_lea.vmem %s0, %s36
    %s38 = sadd.s32 0, 0
    %p39 = scmp.lt.s32.totalorder %s38, 0
    %s40 = scalar_select %p39, %s38, 0
    %s41 = smul.addr %s40, 8
    %s42 = scalar_lea.vmem %s1, %s41
    %s43 = sadd.s32 0, 0
    %p44 = scmp.lt.s32.totalorder %s43, 0
    %s45 = scalar_select %p44, %s43, 0
    %s46 = smul.addr %s45, 4
    %s47 = scalar_lea.vmem %s2, %s46
    %s48 = sadd.s32 0, 0
    %p49 = scmp.lt.s32.totalorder %s48, 0
    %s50 = scalar_select %p49, %s48, 0
    %s51 = smul.addr %s50, 8
    %s52 = scalar_lea.vmem %s0, %s51
    %s53 = sadd.s32 0, 0
    %s54 = sadd.s32 0, 0
    %p55 = scmp.lt.s32.totalorder %s54, 0
    %s56 = scalar_select %p55, %s54, 0
    %s57 = smul.addr %s56, 8
    %s58 = scalar_lea.vmem %s1, %s57
    %s59 = sadd.s32 0, 0
    %s60 = sadd.s32 0, 0
    %p61 = scmp.lt.s32.totalorder %s60, 0
    %s62 = scalar_select %p61, %s60, 0
    %s63 = smul.addr %s62, 4
    %s64 = scalar_lea.vmem %s2, %s63
    %s65 = sadd.s32 0, 0
    %p66 = scmp.eq.s32.totalorder 0, 0
    // Predicated region
    $region14: #{tpu_custom_call.1} parent=1 // pred_check
      %p67 = pneg %p66
    $region15: #{tpu_custom_call.1} parent=1 // pred_check_branch
      %69 = sbr.rel (%p67) target = $region17
    $region16: #{tpu_custom_call.1} parent=1 // pred_region
      %70 = vst [vmem:[#allocation2] sm:$0xff] 0.0
    $region17: #{tpu_custom_call.1} parent=1 // pred_fallthru
      _
    %v71 = vld [vmem:[%s52] sm:$0xff]
    %v72 = vld [vmem:[%s52 + $0x8] sm:$0xff]
    %v73 = vld [vmem:[%s52 + $0x10] sm:$0xff]
    %v74 = vld [vmem:[%s52 + $0x18] sm:$0xff]
    %v75 = vld [vmem:[%s58] sm:$0xff]
    %v76 = vld [vmem:[%s58 + $0x8] sm:$0xff]
    %v77 = vld [vmem:[%s58 + $0x10] sm:$0xff]
    %v78 = vld [vmem:[%s58 + $0x18] sm:$0xff]
    %v79 = vmul.f32 %v71, %v75
    %v80 = vmul.f32 %v72, %v76
    %v81 = vmul.f32 %v73, %v77
    %v82 = vmul.f32 %v74, %v78
    %vm83 = vcmask 130048
    %v84 = vsel %vm83, %v79, 0.0
    %v85 = vsel %vm83, %v80, 0.0
    %v86 = vadd.f32 %v84, %v85
    %v87 = vsel %vm83, %v81, 0.0
    %v88 = vadd.f32 %v86, %v87
    %v89 = vsel %vm83, %v82, 0.0
    %v90 = vadd.f32 %v88, %v89
    %v91 = vrot.slane %v90, 4
    %v92 = vadd.f32 %v90, %v91
    %v93 = vrot.slane %v92, 2
    %v94 = vadd.f32 %v92, %v93
    %v95 = vrot.slane %v94, 1
    %v96 = vadd.f32 %v94, %v95
    %v97 = vld [vmem:[%s64] sm:$0x7]
    %v98 = vadd.f32 %v96, %v97
    %v100 = vrot.slane %v97, 1
    %v102 = vadd.f32 %v98, %v100
    %v103 = vrcp.pop 100.0
    %v104 = vmul.f32 %v97, %v103
    %v105 = vmin.f32 %v104, 1.0
    %v106 = vpow.f32 %v105, 0.75
    %v107 = vlog2.pop %v97
    %v108 = vmul.f32 %v107, 0.6931472
    %v110 = vrot.slane %v108, 2
    %v112 = vsub.f32 %v102, %v110
    %v114 = vrot.slane %v112, 6
    %v116 = vmul.f32 %v106, %v114
    %v117 = vmul.f32 %v116, %v114
    %v119 = vrot.slane %v117, 2
    %vm121 = vcmask 122880
    %v122 = vsel %vm121, %v119, 0.0
    %123 = vadd.xlane.f32.xlu0 %v122
    %v124 = vpop.xlane.xlu0 %123
    %v125 = vrot.slane %v124, 4
    %v126 = vadd.f32 %v124, %v125
    %v127 = vrot.slane %v126, 2
    %v128 = vadd.f32 %v126, %v127
    %v129 = vrot.slane %v128, 1
    %v130 = vadd.f32 %v128, %v129
    %s131 = vtos %v130
    %s132 = smul.f32 %s131, 0.5
    %v133 = vld [vmem:[#allocation2] sm:$0xff]
    %v134 = vstv %s132
    %v135 = vadd.f32 %v133, %v134
    %136 = vst [vmem:[#allocation2] sm:$0xff] %v135
    // Predicated region
    $region18: #{tpu_custom_call.1} parent=1 // pred_check
      _
    $region19: #{tpu_custom_call.1} parent=1 // pred_check_branch
      %138 = sbr.rel (0) target = $region21
    $region20: #{tpu_custom_call.1} parent=1 // pred_region
      %s140 = ssub.s32 128, 128
      %141 = vsyncadd [#allocation3], %s140
      %s143 = sshll.u32 [#allocation2], 4
      %s144 = int_to_ptr.vmem [resolvable:$true] %s143
      %146 = dma.vmem_to_hbm [thread:$0]  %s144, 128, %s3, [#allocation3]
    $region21: #{tpu_custom_call.1} parent=1 // pred_fallthru
      _
    // Predicated region
    $region22: #{tpu_custom_call.1} parent=1 // pred_check
      _
    $region23: #{tpu_custom_call.1} parent=1 // pred_check_branch
      %148 = sbr.rel (0) target = $region25
    $region24: #{tpu_custom_call.1} parent=1 // pred_region
      %149 = dma.done [#allocation3], 128
    $region25: #{tpu_custom_call.1} parent=1 // pred_fallthru
      _
    %150 = vsyncpa [#allocation3], 1

</llo_original>
